<compile_context>
chip_gen: v5e
topology: v5e:2x2
jax: 0.10.0
libtpu: 0.0.40
codegen_flags: <defaults>
</compile_context>

<pallas_src>
import jax
import jax.numpy as jnp
from jax.experimental import pallas as pl
from jax.experimental.pallas import tpu as pltpu


def se_block_kernel(x_ref, w1t_ref, b1_ref, w2t_ref, b2_ref, o_ref):
    # One batch group (BB, C, L) per grid step.
    x = x_ref[...]                                          # (BB, C, L) io dtype

    # ---- squeeze: mean over time, accumulated in f32 ----
    s = jnp.mean(x.astype(jnp.float32), axis=-1)            # (BB, C) f32

    # ---- excitation: 1x1 conv -> ReLU -> 1x1 conv -> sigmoid (batched) ----
    h = jnp.dot(s, w1t_ref[...],
                preferred_element_type=jnp.float32) + b1_ref[...]   # (BB, SE)
    h = jnp.maximum(h, 0.0)
    g = jnp.dot(h, w2t_ref[...],
                preferred_element_type=jnp.float32) + b2_ref[...]   # (BB, C)
    g = jax.nn.sigmoid(g).astype(x.dtype)                   # (BB, C)

    # ---- scale: single vld -> vmul -> vst pass over the big tile ----
    o_ref[...] = x * g[:, :, None]                          # (BB, C, L)


def _pick_batch_block(B, per_elem_bytes, target_bytes):
    """Largest divisor of B whose (BB, C, L) block stays under target_bytes."""
    bb = max(1, min(B, target_bytes // max(per_elem_bytes, 1)))
    while B % bb:
        bb -= 1
    return bb


def se_block(x, w1, b1, w2, b2, *, target_block_bytes=2 << 20):
    """x: (B, C, L); w1: (SE, C); b1: (SE, 1); w2: (C, SE); b2: (C, 1).

    I/O is done in x.dtype (use bf16 x to halve HBM traffic); gate compute is
    always f32 inside the kernel.
    """
    B, C, L = x.shape
    SE = w1.shape[0]
    itemsize = jnp.dtype(x.dtype).itemsize

    # TODO(synk): arbitrary L should be padded to a multiple of 128 here (with
    #             a masked mean) to keep the output lane-dense; the example
    #             uses L % 128 == 0 so no padding is needed.
    bb = _pick_batch_block(B, C * L * itemsize, target_block_bytes)
    block_bytes = bb * C * L * itemsize

    # Pre-transpose / reshape the tiny params on the host so the kernel does
    # plain row-major dots with no in-kernel transposes; params held in f32.
    w1t = w1.astype(jnp.float32).T                # (C, SE)
    w2t = w2.astype(jnp.float32).T                # (SE, C)
    b1r = b1.astype(jnp.float32).reshape(1, SE)   # (1, SE)
    b2r = b2.astype(jnp.float32).reshape(1, C)    # (1, C)

    cost = pl.CostEstimate(
        flops=2 * B * C * L + 4 * B * C * SE,          # scale pass + 2 matmuls
        transcendentals=B * C,                          # sigmoid
        bytes_accessed=2 * B * C * L * itemsize)        # read x + write out

    # Double-buffered input + output blocks, plus headroom for params/regalloc.
    vmem_limit = int(min(100 << 20, 4 * block_bytes + (8 << 20)))

    return pl.pallas_call(
        se_block_kernel,
        out_shape=jax.ShapeDtypeStruct((B, C, L), x.dtype),
        grid_spec=pltpu.PrefetchScalarGridSpec(
            num_scalar_prefetch=0,
            grid=(B // bb,),
            in_specs=[
                pl.BlockSpec((bb, C, L), lambda i: (i, 0, 0)),   # x batch group
                pl.BlockSpec((C, SE), lambda i: (0, 0)),         # conv1 W^T (resident)
                pl.BlockSpec((1, SE), lambda i: (0, 0)),         # conv1 bias
                pl.BlockSpec((SE, C), lambda i: (0, 0)),         # conv2 W^T (resident)
                pl.BlockSpec((1, C), lambda i: (0, 0)),          # conv2 bias
            ],
            out_specs=pl.BlockSpec((bb, C, L), lambda i: (i, 0, 0)),
        ),
        compiler_params=pltpu.CompilerParams(
            dimension_semantics=("parallel",),     # batch groups independent
            vmem_limit_bytes=vmem_limit),
        cost_estimate=cost,
    )(x, w1t, b1r, w2t, b2r)


def reference(x, w1, b1, w2, b2):
    """Plain-JAX mirror of SEBlock.forward with lengths=None (f32 math)."""
    xf = x.astype(jnp.float32)
    s = xf.mean(axis=-1)                                     # (B, C)
    h = jnp.maximum(s @ w1.T + b1[:, 0], 0.0)                # (B, SE)
    g = jax.nn.sigmoid(h @ w2.T + b2[:, 0])                  # (B, C)
    return xf * g[:, :, None]


if __name__ == "__main__":
    # Sizes consistent with the docstring example (B=8, C=64, SE=16); L chosen
    # as a multiple of 128 so the output block is lane-dense.
    B, C, SE, L = 8, 64, 16, 128

    key = jax.random.PRNGKey(0)
    k = jax.random.split(key, 5)
    x = jax.random.normal(k[0], (B, C, L), jnp.float32)
    w1 = jax.random.uniform(k[1], (SE, C), jnp.float32, -0.3, 0.3)
    b1 = jax.random.uniform(k[2], (SE, 1), jnp.float32, -0.3, 0.3)
    w2 = jax.random.uniform(k[3], (C, SE), jnp.float32, -0.5, 0.5)
    b2 = jax.random.uniform(k[4], (C, 1), jnp.float32, -0.5, 0.5)

    # f32 I/O path
    out = se_block(x, w1, b1, w2, b2)
    jax.block_until_ready(out)
    ref = reference(x, w1, b1, w2, b2)
    assert out.shape == (B, C, L)
    err = jnp.max(jnp.abs(out - ref))
    assert jnp.allclose(out, ref, atol=1e-5, rtol=1e-5), f"f32 max err {err}"

    # bf16 I/O path (halved HBM traffic; gate compute still f32 in-kernel)
    x_bf = x.astype(jnp.bfloat16)
    out_bf = se_block(x_bf, w1, b1, w2, b2)
    jax.block_until_ready(out_bf)
    ref_bf = reference(x_bf, w1, b1, w2, b2)
    err_bf = jnp.max(jnp.abs(out_bf.astype(jnp.float32) - ref_bf))
    assert err_bf < 5e-2, f"bf16 max err {err_bf}"

    print("KERNEL_OK")
</pallas_src>

<mosaic_0001>
module attributes {stable_mosaic.version = 11 : i64} {
  func.func @se_block_kernel(%arg0: i32, %arg1: memref<8x64x128xf32, #tpu.memory_space<vmem>>, %arg2: memref<64x16xf32, #tpu.memory_space<vmem>>, %arg3: memref<1x16xf32, #tpu.memory_space<vmem>>, %arg4: memref<16x64xf32, #tpu.memory_space<vmem>>, %arg5: memref<1x64xf32, #tpu.memory_space<vmem>>, %arg6: memref<8x64x128xf32, #tpu.memory_space<vmem>>) attributes {dimension_semantics = [#tpu.dimension_semantics<parallel>], iteration_bounds = array<i64: 1>, scalar_prefetch = 0 : i64, scratch_operands = 0 : i64, tpu.core_type = #tpu.core_type<tc>, window_params = [{transform_indices = @transform_0, window_bounds = array<i64: 8, 64, 128>}, {pipeline_mode = #tpu.pipeline_mode<synchronous>, transform_indices = @transform_1, window_bounds = array<i64: 64, 16>}, {pipeline_mode = #tpu.pipeline_mode<synchronous>, transform_indices = @transform_2, window_bounds = array<i64: 1, 16>}, {pipeline_mode = #tpu.pipeline_mode<synchronous>, transform_indices = @transform_3, window_bounds = array<i64: 16, 64>}, {pipeline_mode = #tpu.pipeline_mode<synchronous>, transform_indices = @transform_4, window_bounds = array<i64: 1, 64>}, {transform_indices = @transform_5, window_bounds = array<i64: 8, 64, 128>}]} {
    %c0 = arith.constant 0 : index
    %c0_0 = arith.constant 0 : index
    %c0_1 = arith.constant 0 : index
    %0 = vector.load %arg1[%c0, %c0_0, %c0_1] : memref<8x64x128xf32, #tpu.memory_space<vmem>>, vector<8x64x128xf32>
    %cst = arith.constant dense<0.000000e+00> : vector<8x64xf32>
    %1 = vector.multi_reduction <add>, %0, %cst [2] : vector<8x64x128xf32> to vector<8x64xf32>
    %cst_2 = arith.constant 1.280000e+02 : f32
    %2 = vector.broadcast %cst_2 : f32 to vector<8x64xf32>
    %3 = arith.divf %1, %2 : vector<8x64xf32>
    %c0_3 = arith.constant 0 : index
    %c0_4 = arith.constant 0 : index
    %4 = vector.load %arg2[%c0_3, %c0_4] : memref<64x16xf32, #tpu.memory_space<vmem>>, vector<64x16xf32>
    %cst_5 = arith.constant dense<0.000000e+00> : vector<8x16xf32>
    %5 = tpu.matmul %3, %4, %cst_5 {dimension_numbers = #tpu.dot_dimension_numbers<[1], [0], [0], [1], [0, 0, 1, 1], [], []>} : vector<8x64xf32>, vector<64x16xf32>, vector<8x16xf32> -> vector<8x16xf32>
    %c0_6 = arith.constant 0 : index
    %c0_7 = arith.constant 0 : index
    %6 = vector.load %arg3[%c0_6, %c0_7] : memref<1x16xf32, #tpu.memory_space<vmem>>, vector<1x16xf32>
    %7 = vector.broadcast %6 : vector<1x16xf32> to vector<8x16xf32>
    %8 = arith.addf %5, %7 : vector<8x16xf32>
    %cst_8 = arith.constant 0.000000e+00 : f32
    %9 = vector.broadcast %cst_8 : f32 to vector<8x16xf32>
    %10 = arith.maximumf %8, %9 : vector<8x16xf32>
    %c0_9 = arith.constant 0 : index
    %c0_10 = arith.constant 0 : index
    %11 = vector.load %arg4[%c0_9, %c0_10] : memref<16x64xf32, #tpu.memory_space<vmem>>, vector<16x64xf32>
    %cst_11 = arith.constant dense<0.000000e+00> : vector<8x64xf32>
    %12 = tpu.matmul %10, %11, %cst_11 {dimension_numbers = #tpu.dot_dimension_numbers<[1], [0], [0], [1], [0, 0, 1, 1], [], []>} : vector<8x16xf32>, vector<16x64xf32>, vector<8x64xf32> -> vector<8x64xf32>
    %c0_12 = arith.constant 0 : index
    %c0_13 = arith.constant 0 : index
    %13 = vector.load %arg5[%c0_12, %c0_13] : memref<1x64xf32, #tpu.memory_space<vmem>>, vector<1x64xf32>
    %14 = vector.broadcast %13 : vector<1x64xf32> to vector<8x64xf32>
    %15 = arith.addf %12, %14 : vector<8x64xf32>
    %16 = arith.negf %15 : vector<8x64xf32>
    %17 = math.exp %16 : vector<8x64xf32>
    %cst_14 = arith.constant 1.000000e+00 : f32
    %18 = vector.broadcast %cst_14 : f32 to vector<8x64xf32>
    %19 = arith.addf %18, %17 : vector<8x64xf32>
    %20 = arith.divf %18, %19 : vector<8x64xf32>
    %21 = vector.shape_cast %20 : vector<8x64xf32> to vector<8x64x1xf32>
    %22 = vector.broadcast %21 : vector<8x64x1xf32> to vector<8x64x128xf32>
    %23 = arith.mulf %0, %22 : vector<8x64x128xf32>
    %c0_15 = arith.constant 0 : index
    %c0_16 = arith.constant 0 : index
    %c0_17 = arith.constant 0 : index
    %24 = vector.load %arg6[%c0_15, %c0_16, %c0_17] : memref<8x64x128xf32, #tpu.memory_space<vmem>>, vector<8x64x128xf32>
    tpu.vector_store %arg6[%c0_15, %c0_16, %c0_17], %23 {strides = array<i32>} : memref<8x64x128xf32, #tpu.memory_space<vmem>>, vector<8x64x128xf32>,
    return
  }
  func.func @transform_0(%arg0: i32) -> (i32, i32, i32) {
    %c0_i32 = arith.constant 0 : i32
    %c0_i32_0 = arith.constant 0 : i32
    %c0_i32_1 = arith.constant 0 : i32
    return %arg0, %c0_i32, %c0_i32_0 : i32, i32, i32
  }
  func.func @transform_1(%arg0: i32) -> (i32, i32) {
    %c0_i32 = arith.constant 0 : i32
    %c0_i32_0 = arith.constant 0 : i32
    %c0_i32_1 = arith.constant 0 : i32
    return %c0_i32, %c0_i32_0 : i32, i32
  }
  func.func @transform_2(%arg0: i32) -> (i32, i32) {
    %c0_i32 = arith.constant 0 : i32
    %c0_i32_0 = arith.constant 0 : i32
    %c0_i32_1 = arith.constant 0 : i32
    return %c0_i32, %c0_i32_0 : i32, i32
  }
  func.func @transform_3(%arg0: i32) -> (i32, i32) {
    %c0_i32 = arith.constant 0 : i32
    %c0_i32_0 = arith.constant 0 : i32
    %c0_i32_1 = arith.constant 0 : i32
    return %c0_i32, %c0_i32_0 : i32, i32
  }
  func.func @transform_4(%arg0: i32) -> (i32, i32) {
    %c0_i32 = arith.constant 0 : i32
    %c0_i32_0 = arith.constant 0 : i32
    %c0_i32_1 = arith.constant 0 : i32
    return %c0_i32, %c0_i32_0 : i32, i32
  }
  func.func @transform_5(%arg0: i32) -> (i32, i32, i32) {
    %c0_i32 = arith.constant 0 : i32
    %c0_i32_0 = arith.constant 0 : i32
    %c0_i32_1 = arith.constant 0 : i32
    return %arg0, %c0_i32, %c0_i32_0 : i32, i32, i32
  }
}

</mosaic_0001>

<llo_original>
// kernel: tpu_custom_call.1
$region0: #{tpu_custom_call.1}
  #allocation0 [shape = 'u32[]', space=smem, size = 0x4, offset = 0x4, fixed_abs, tag = 'smem constant byte address 0x4 - core index']
  #allocation1 [shape = 'u32[72,128]{1,0:T(1,128)}', space=vmem, size = 0x9000, scoped, tag = 'internal scratch']
  %s0 = inlined_call_operand.hbm [shape: f32[8,64,128], index: 0, kind: input, shape index: {}]
  %s1 = inlined_call_operand.vmem [shape: f32[64,16], index: 1, kind: input, shape index: {}]
  %s2 = inlined_call_operand.vmem [shape: f32[1,16], index: 2, kind: input, shape index: {}]
  %s3 = inlined_call_operand.vmem [shape: f32[16,64], index: 3, kind: input, shape index: {}]
  %s4 = inlined_call_operand.vmem [shape: f32[1,64], index: 4, kind: input, shape index: {}]
  %s5 = inlined_call_operand.hbm [shape: f32[8,64,128], index: 5, kind: output, shape index: {}]
  %s6 = sld [smem:[#allocation0]]
  $region34: #{tpu_custom_call.1} parent=0
    _
  %s8 = ssub.s32 1, %s6
  %s9 = scalar_select 0, %s8, %s6
  $region1: #{tpu_custom_call.1} parent=0
    #allocation2 [shape = 'u8[262144]{0}', space=vmem, size = 0x40000, scoped, tag = 'input window, operand 0, single buffered']
    #allocation3 [shape = 's32[1]{0}', space=sflag, size = 0x4, scoped, tag = 'scoped memory for tpu_custom_call.1']
    #allocation4 [shape = 's32[1]{0}', space=sflag, size = 0x4, scoped, tag = 'scoped memory for tpu_custom_call.1']
    #allocation5 [shape = 'u8[262144]{0}', space=vmem, size = 0x40000, scoped, tag = 'output window, operand 0, single buffered']
    %10 = vsyncpa [#allocation3], 0
    %11 = vsyncpa [#allocation4], 0
    // Predicated region
    $region2: #{tpu_custom_call.1} parent=1 // pred_check
      _
    $region3: #{tpu_custom_call.1} parent=1 // pred_check_branch
      %13 = sbr.rel (0) target = $region5
    $region4: #{tpu_custom_call.1} parent=1 // pred_region
      %15 = vsyncadd [#allocation3], 0
      %s16 = sshll.u32 %s0, 4
      %s17 = int_to_ptr.hbm [resolvable:$true] %s16
      %s18 = sshll.u32 [#allocation2], 4
      %s19 = int_to_ptr.vmem [resolvable:$true] %s18
      %24 = dma.hbm_to_vmem [thread:$0]  %s17, 8192, %s19, [#allocation3], 128, 128, 8
    $region5: #{tpu_custom_call.1} parent=1 // pred_fallthru
      _
    // Predicated region
    $region6: #{tpu_custom_call.1} parent=1 // pred_check
      _
    $region7: #{tpu_custom_call.1} parent=1 // pred_check_branch
      %26 = sbr.rel (0) target = $region9
    $region8: #{tpu_custom_call.1} parent=1 // pred_region
      _
    $region9: #{tpu_custom_call.1} parent=1 // pred_fallthru
      _
    // Predicated region
    $region10: #{tpu_custom_call.1} parent=1 // pred_check
      _
    $region11: #{tpu_custom_call.1} parent=1 // pred_check_branch
      %28 = sbr.rel (0) target = $region13
    $region12: #{tpu_custom_call.1} parent=1 // pred_region
      _
    $region13: #{tpu_custom_call.1} parent=1 // pred_fallthru
      _
    // Predicated region
    $region14: #{tpu_custom_call.1} parent=1 // pred_check
      _
    $region15: #{tpu_custom_call.1} parent=1 // pred_check_branch
      %30 = sbr.rel (0) target = $region17
    $region16: #{tpu_custom_call.1} parent=1 // pred_region
      _
    $region17: #{tpu_custom_call.1} parent=1 // pred_fallthru
      _
    // Predicated region
    $region18: #{tpu_custom_call.1} parent=1 // pred_check
      _
    $region19: #{tpu_custom_call.1} parent=1 // pred_check_branch
      %32 = sbr.rel (0) target = $region21
    $region20: #{tpu_custom_call.1} parent=1 // pred_region
      _
    $region21: #{tpu_custom_call.1} parent=1 // pred_fallthru
      _
    // Predicated region
    $region22: #{tpu_custom_call.1} parent=1 // pred_check
      _
    $region23: #{tpu_custom_call.1} parent=1 // pred_check_branch
      %34 = sbr.rel (0) target = $region25
    $region24: #{tpu_custom_call.1} parent=1 // pred_region
      %36 = dma.done [#allocation3], 8192
    $region25: #{tpu_custom_call.1} parent=1 // pred_fallthru
      _
    %v37 = vld [vmem:[#allocation2] sm:$0xff]
    %v38 = vld [vmem:[#allocation2 + $0x8] sm:$0xff]
    %v39 = vld [vmem:[#allocation2 + $0x10] sm:$0xff]
    %v40 = vld [vmem:[#allocation2 + $0x18] sm:$0xff]
    %v41 = vld [vmem:[#allocation2 + $0x20] sm:$0xff]
    %v42 = vld [vmem:[#allocation2 + $0x28] sm:$0xff]
    %v43 = vld [vmem:[#allocation2 + $0x30] sm:$0xff]
    %v44 = vld [vmem:[#allocation2 + $0x38] sm:$0xff]
    %v45 = vld [vmem:[#allocation2 + $0x40] sm:$0xff]
    %v46 = vld [vmem:[#allocation2 + $0x48] sm:$0xff]
    %v47 = vld [vmem:[#allocation2 + $0x50] sm:$0xff]
    %v48 = vld [vmem:[#allocation2 + $0x58] sm:$0xff]
    %v49 = vld [vmem:[#allocation2 + $0x60] sm:$0xff]
    %v50 = vld [vmem:[#allocation2 + $0x68] sm:$0xff]
    %v51 = vld [vmem:[#allocation2 + $0x70] sm:$0xff]
    %v52 = vld [vmem:[#allocation2 + $0x78] sm:$0xff]
    %v53 = vld [vmem:[#allocation2 + $0x80] sm:$0xff]
    %v54 = vld [vmem:[#allocation2 + $0x88] sm:$0xff]
    %v55 = vld [vmem:[#allocation2 + $0x90] sm:$0xff]
    %v56 = vld [vmem:[#allocation2 + $0x98] sm:$0xff]
    %v57 = vld [vmem:[#allocation2 + $0xa0] sm:$0xff]
    %v58 = vld [vmem:[#allocation2 + $0xa8] sm:$0xff]
    %v59 = vld [vmem:[#allocation2 + $0xb0] sm:$0xff]
    %v60 = vld [vmem:[#allocation2 + $0xb8] sm:$0xff]
    %v61 = vld [vmem:[#allocation2 + $0xc0] sm:$0xff]
    %v62 = vld [vmem:[#allocation2 + $0xc8] sm:$0xff]
    %v63 = vld [vmem:[#allocation2 + $0xd0] sm:$0xff]
    %v64 = vld [vmem:[#allocation2 + $0xd8] sm:$0xff]
    %v65 = vld [vmem:[#allocation2 + $0xe0] sm:$0xff]
    %v66 = vld [vmem:[#allocation2 + $0xe8] sm:$0xff]
    %v67 = vld [vmem:[#allocation2 + $0xf0] sm:$0xff]
    %v68 = vld [vmem:[#allocation2 + $0xf8] sm:$0xff]
    %v69 = vld [vmem:[#allocation2 + $0x100] sm:$0xff]
    %v70 = vld [vmem:[#allocation2 + $0x108] sm:$0xff]
    %v71 = vld [vmem:[#allocation2 + $0x110] sm:$0xff]
    %v72 = vld [vmem:[#allocation2 + $0x118] sm:$0xff]
    %v73 = vld [vmem:[#allocation2 + $0x120] sm:$0xff]
    %v74 = vld [vmem:[#allocation2 + $0x128] sm:$0xff]
    %v75 = vld [vmem:[#allocation2 + $0x130] sm:$0xff]
    %v76 = vld [vmem:[#allocation2 + $0x138] sm:$0xff]
    %v77 = vld [vmem:[#allocation2 + $0x140] sm:$0xff]
    %v78 = vld [vmem:[#allocation2 + $0x148] sm:$0xff]
    %v79 = vld [vmem:[#allocation2 + $0x150] sm:$0xff]
    %v80 = vld [vmem:[#allocation2 + $0x158] sm:$0xff]
    %v81 = vld [vmem:[#allocation2 + $0x160] sm:$0xff]
    %v82 = vld [vmem:[#allocation2 + $0x168] sm:$0xff]
    %v83 = vld [vmem:[#allocation2 + $0x170] sm:$0xff]
    %v84 = vld [vmem:[#allocation2 + $0x178] sm:$0xff]
    %v85 = vld [vmem:[#allocation2 + $0x180] sm:$0xff]
    %v86 = vld [vmem:[#allocation2 + $0x188] sm:$0xff]
    %v87 = vld [vmem:[#allocation2 + $0x190] sm:$0xff]
    %v88 = vld [vmem:[#allocation2 + $0x198] sm:$0xff]
    %v89 = vld [vmem:[#allocation2 + $0x1a0] sm:$0xff]
    %v90 = vld [vmem:[#allocation2 + $0x1a8] sm:$0xff]
    %v91 = vld [vmem:[#allocation2 + $0x1b0] sm:$0xff]
    %v92 = vld [vmem:[#allocation2 + $0x1b8] sm:$0xff]
    %v93 = vld [vmem:[#allocation2 + $0x1c0] sm:$0xff]
    %v94 = vld [vmem:[#allocation2 + $0x1c8] sm:$0xff]
    %v95 = vld [vmem:[#allocation2 + $0x1d0] sm:$0xff]
    %v96 = vld [vmem:[#allocation2 + $0x1d8] sm:$0xff]
    %v97 = vld [vmem:[#allocation2 + $0x1e0] sm:$0xff]
    %v98 = vld [vmem:[#allocation2 + $0x1e8] sm:$0xff]
    %v99 = vld [vmem:[#allocation2 + $0x1f0] sm:$0xff]
    %v100 = vld [vmem:[#allocation2 + $0x1f8] sm:$0xff]
    %101 = vadd.xlane.f32.xlu0 %v37
    %v102 = vpop.xlane.xlu0 %101
    %103 = vadd.xlane.f32.xlu0 %v38
    %v104 = vpop.xlane.xlu0 %103
    %105 = vadd.xlane.f32.xlu0 %v39
    %v106 = vpop.xlane.xlu0 %105
    %107 = vadd.xlane.f32.xlu0 %v40
    %v108 = vpop.xlane.xlu0 %107
    %109 = vadd.xlane.f32.xlu0 %v41
    %v110 = vpop.xlane.xlu0 %109
    %111 = vadd.xlane.f32.xlu0 %v42
    %v112 = vpop.xlane.xlu0 %111
    %113 = vadd.xlane.f32.xlu0 %v43
    %v114 = vpop.xlane.xlu0 %113
    %115 = vadd.xlane.f32.xlu0 %v44
    %v116 = vpop.xlane.xlu0 %115
    %117 = vadd.xlane.f32.xlu0 %v45
    %v118 = vpop.xlane.xlu0 %117
    %119 = vadd.xlane.f32.xlu0 %v46
    %v120 = vpop.xlane.xlu0 %119
    %121 = vadd.xlane.f32.xlu0 %v47
    %v122 = vpop.xlane.xlu0 %121
    %123 = vadd.xlane.f32.xlu0 %v48
    %v124 = vpop.xlane.xlu0 %123
    %125 = vadd.xlane.f32.xlu0 %v49
    %v126 = vpop.xlane.xlu0 %125
    %127 = vadd.xlane.f32.xlu0 %v50
    %v128 = vpop.xlane.xlu0 %127
    %129 = vadd.xlane.f32.xlu0 %v51
    %v130 = vpop.xlane.xlu0 %129
    %131 = vadd.xlane.f32.xlu0 %v52
    %v132 = vpop.xlane.xlu0 %131
    %133 = vadd.xlane.f32.xlu0 %v53
    %v134 = vpop.xlane.xlu0 %133
    %135 = vadd.xlane.f32.xlu0 %v54
    %v136 = vpop.xlane.xlu0 %135
    %137 = vadd.xlane.f32.xlu0 %v55
    %v138 = vpop.xlane.xlu0 %137
    %139 = vadd.xlane.f32.xlu0 %v56
    %v140 = vpop.xlane.xlu0 %139
    %141 = vadd.xlane.f32.xlu0 %v57
    %v142 = vpop.xlane.xlu0 %141
    %143 = vadd.xlane.f32.xlu0 %v58
    %v144 = vpop.xlane.xlu0 %143
    %145 = vadd.xlane.f32.xlu0 %v59
    %v146 = vpop.xlane.xlu0 %145
    %147 = vadd.xlane.f32.xlu0 %v60
    %v148 = vpop.xlane.xlu0 %147
    %149 = vadd.xlane.f32.xlu0 %v61
    %v150 = vpop.xlane.xlu0 %149
    %151 = vadd.xlane.f32.xlu0 %v62
    %v152 = vpop.xlane.xlu0 %151
    %153 = vadd.xlane.f32.xlu0 %v63
    %v154 = vpop.xlane.xlu0 %153
    %155 = vadd.xlane.f32.xlu0 %v64
    %v156 = vpop.xlane.xlu0 %155
    %157 = vadd.xlane.f32.xlu0 %v65
    %v158 = vpop.xlane.xlu0 %157
    %159 = vadd.xlane.f32.xlu0 %v66
    %v160 = vpop.xlane.xlu0 %159
    %161 = vadd.xlane.f32.xlu0 %v67
    %v162 = vpop.xlane.xlu0 %161
    %163 = vadd.xlane.f32.xlu0 %v68
    %v164 = vpop.xlane.xlu0 %163
    %165 = vadd.xlane.f32.xlu0 %v69
    %v166 = vpop.xlane.xlu0 %165
    %167 = vadd.xlane.f32.xlu0 %v70
    %v168 = vpop.xlane.xlu0 %167
    %169 = vadd.xlane.f32.xlu0 %v71
    %v170 = vpop.xlane.xlu0 %169
    %171 = vadd.xlane.f32.xlu0 %v72
    %v172 = vpop.xlane.xlu0 %171
    %173 = vadd.xlane.f32.xlu0 %v73
    %v174 = vpop.xlane.xlu0 %173
    %175 = vadd.xlane.f32.xlu0 %v74
    %v176 = vpop.xlane.xlu0 %175
    %177 = vadd.xlane.f32.xlu0 %v75
    %v178 = vpop.xlane.xlu0 %177
    %179 = vadd.xlane.f32.xlu0 %v76
    %v180 = vpop.xlane.xlu0 %179
    %181 = vadd.xlane.f32.xlu0 %v77
    %v182 = vpop.xlane.xlu0 %181
    %183 = vadd.xlane.f32.xlu0 %v78
    %v184 = vpop.xlane.xlu0 %183
    %185 = vadd.xlane.f32.xlu0 %v79
    %v186 = vpop.xlane.xlu0 %185
    %187 = vadd.xlane.f32.xlu0 %v80
    %v188 = vpop.xlane.xlu0 %187
    %189 = vadd.xlane.f32.xlu0 %v81
    %v190 = vpop.xlane.xlu0 %189
    %191 = vadd.xlane.f32.xlu0 %v82
    %v192 = vpop.xlane.xlu0 %191
    %193 = vadd.xlane.f32.xlu0 %v83
    %v194 = vpop.xlane.xlu0 %193
    %195 = vadd.xlane.f32.xlu0 %v84
    %v196 = vpop.xlane.xlu0 %195
    %197 = vadd.xlane.f32.xlu0 %v85
    %v198 = vpop.xlane.xlu0 %197
    %199 = vadd.xlane.f32.xlu0 %v86
    %v200 = vpop.xlane.xlu0 %199
    %201 = vadd.xlane.f32.xlu0 %v87
    %v202 = vpop.xlane.xlu0 %201
    %203 = vadd.xlane.f32.xlu0 %v88
    %v204 = vpop.xlane.xlu0 %203
    %205 = vadd.xlane.f32.xlu0 %v89
    %v206 = vpop.xlane.xlu0 %205
    %207 = vadd.xlane.f32.xlu0 %v90
    %v208 = vpop.xlane.xlu0 %207
    %209 = vadd.xlane.f32.xlu0 %v91
    %v210 = vpop.xlane.xlu0 %209
    %211 = vadd.xlane.f32.xlu0 %v92
    %v212 = vpop.xlane.xlu0 %211
    %213 = vadd.xlane.f32.xlu0 %v93
    %v214 = vpop.xlane.xlu0 %213
    %215 = vadd.xlane.f32.xlu0 %v94
    %v216 = vpop.xlane.xlu0 %215
    %217 = vadd.xlane.f32.xlu0 %v95
    %v218 = vpop.xlane.xlu0 %217
    %219 = vadd.xlane.f32.xlu0 %v96
    %v220 = vpop.xlane.xlu0 %219
    %221 = vadd.xlane.f32.xlu0 %v97
    %v222 = vpop.xlane.xlu0 %221
    %223 = vadd.xlane.f32.xlu0 %v98
    %v224 = vpop.xlane.xlu0 %223
    %225 = vadd.xlane.f32.xlu0 %v99
    %v226 = vpop.xlane.xlu0 %225
    %227 = vadd.xlane.f32.xlu0 %v100
    %v228 = vpop.xlane.xlu0 %227
    %v229 = vrcp.pop 128.0
    %v230 = vmul.f32 128.0, %v229
    %v231 = vsub.f32 1.0, %v230
    %v232 = vmul.f32 %v229, %v231
    %v233 = vadd.f32 %v229, %v232
    %vm234 = vweird.f32 %v229
    %v235 = vsel %vm234, %v229, %v233
    %v236 = vmul.f32 %v102, %v235
    %v237 = vmul.f32 %v104, %v235
    %v238 = vmul.f32 %v106, %v235
    %v239 = vmul.f32 %v108, %v235
    %v240 = vmul.f32 %v110, %v235
    %v241 = vmul.f32 %v112, %v235
    %v242 = vmul.f32 %v114, %v235
    %v243 = vmul.f32 %v116, %v235
    %v244 = vmul.f32 %v118, %v235
    %v245 = vmul.f32 %v120, %v235
    %v246 = vmul.f32 %v122, %v235
    %v247 = vmul.f32 %v124, %v235
    %v248 = vmul.f32 %v126, %v235
    %v249 = vmul.f32 %v128, %v235
    %v250 = vmul.f32 %v130, %v235
    %v251 = vmul.f32 %v132, %v235
    %v252 = vmul.f32 %v134, %v235
    %v253 = vmul.f32 %v136, %v235
    %v254 = vmul.f32 %v138, %v235
    %v255 = vmul.f32 %v140, %v235
    %v256 = vmul.f32 %v142, %v235
    %v257 = vmul.f32 %v144, %v235
    %v258 = vmul.f32 %v146, %v235
    %v259 = vmul.f32 %v148, %v235
    %v260 = vmul.f32 %v150, %v235
    %v261 = vmul.f32 %v152, %v235
    %v262 = vmul.f32 %v154, %v235
    %v263 = vmul.f32 %v156, %v235
    %v264 = vmul.f32 %v158, %v235
    %v265 = vmul.f32 %v160, %v235
    %v266 = vmul.f32 %v162, %v235
    %v267 = vmul.f32 %v164, %v235
    %v268 = vmul.f32 %v166, %v235
    %v269 = vmul.f32 %v168, %v235
    %v270 = vmul.f32 %v170, %v235
    %v271 = vmul.f32 %v172, %v235
    %v272 = vmul.f32 %v174, %v235
    %v273 = vmul.f32 %v176, %v235
    %v274 = vmul.f32 %v178, %v235
    %v275 = vmul.f32 %v180, %v235
    %v276 = vmul.f32 %v182, %v235
    %v277 = vmul.f32 %v184, %v235
    %v278 = vmul.f32 %v186, %v235
    %v279 = vmul.f32 %v188, %v235
    %v280 = vmul.f32 %v190, %v235
    %v281 = vmul.f32 %v192, %v235
    %v282 = vmul.f32 %v194, %v235
    %v283 = vmul.f32 %v196, %v235
    %v284 = vmul.f32 %v198, %v235
    %v285 = vmul.f32 %v200, %v235
    %v286 = vmul.f32 %v202, %v235
    %v287 = vmul.f32 %v204, %v235
    %v288 = vmul.f32 %v206, %v235
    %v289 = vmul.f32 %v208, %v235
    %v290 = vmul.f32 %v210, %v235
    %v291 = vmul.f32 %v212, %v235
    %v292 = vmul.f32 %v214, %v235
    %v293 = vmul.f32 %v216, %v235
    %v294 = vmul.f32 %v218, %v235
    %v295 = vmul.f32 %v220, %v235
    %v296 = vmul.f32 %v222, %v235
    %v297 = vmul.f32 %v224, %v235
    %v298 = vmul.f32 %v226, %v235
    %v299 = vmul.f32 %v228, %v235
    %v300 = vld [vmem:[%s1] sm:$0xff]
    %v301 = vld [vmem:[%s1 + $0x8] sm:$0xff]
    %v302 = vld [vmem:[%s1 + $0x10] sm:$0xff]
    %v303 = vld [vmem:[%s1 + $0x18] sm:$0xff]
    %v304 = vld [vmem:[%s1 + $0x20] sm:$0xff]
    %v305 = vld [vmem:[%s1 + $0x28] sm:$0xff]
    %v306 = vld [vmem:[%s1 + $0x30] sm:$0xff]
    %v307 = vld [vmem:[%s1 + $0x38] sm:$0xff]
    %v308 = vld [vmem:[%s2] sm:$0x1]
    %v310 = vperm.slane %v308, 0
    %v376 = vlaneseq
    %v377 = vand.u32 %v376, 127
    %v378 = vperm.slane %v236, %v377
    %v379 = vadd.s32 %v377, 4294967288
    %v380 = vperm.slane %v237, %v379
    %vm381 = vcmask 130112
    %v382 = vsel %vm381, %v380, %v378
    %v383 = vadd.s32 %v377, 4294967280
    %v384 = vperm.slane %v238, %v383
    %vm385 = vcmask 195712
    %v386 = vsel %vm385, %v384, %v382
    %v387 = vadd.s32 %v377, 4294967272
    %v388 = vperm.slane %v239, %v387
    %vm389 = vcmask 261312
    %v390 = vsel %vm389, %v388, %v386
    %v391 = vadd.s32 %v377, 4294967264
    %v392 = vperm.slane %v240, %v391
    %vm393 = vcmask 326912
    %v394 = vsel %vm393, %v392, %v390
    %v395 = vadd.s32 %v377, 4294967256
    %v396 = vperm.slane %v241, %v395
    %vm397 = vcmask 392512
    %v398 = vsel %vm397, %v396, %v394
    %v399 = vadd.s32 %v377, 4294967248
    %v400 = vperm.slane %v242, %v399
    %vm401 = vcmask 458112
    %v402 = vsel %vm401, %v400, %v398
    %v403 = vadd.s32 %v377, 4294967240
    %v404 = vperm.slane %v243, %v403
    %vm405 = vcmask 523712
    %v406 = vsel %vm405, %v404, %v402
    %v407 = vperm.slane %v244, %v377
    %v408 = vperm.slane %v245, %v379
    %v409 = vsel %vm381, %v408, %v407
    %v410 = vperm.slane %v246, %v383
    %v411 = vsel %vm385, %v410, %v409
    %v412 = vperm.slane %v247, %v387
    %v413 = vsel %vm389, %v412, %v411
    %v414 = vperm.slane %v248, %v391
    %v415 = vsel %vm393, %v414, %v413
    %v416 = vperm.slane %v249, %v395
    %v417 = vsel %vm397, %v416, %v415
    %v418 = vperm.slane %v250, %v399
    %v419 = vsel %vm401, %v418, %v417
    %v420 = vperm.slane %v251, %v403
    %v421 = vsel %vm405, %v420, %v419
    %v422 = vperm.slane %v252, %v377
    %v423 = vperm.slane %v253, %v379
    %v424 = vsel %vm381, %v423, %v422
    %v425 = vperm.slane %v254, %v383
    %v426 = vsel %vm385, %v425, %v424
    %v427 = vperm.slane %v255, %v387
    %v428 = vsel %vm389, %v427, %v426
    %v429 = vperm.slane %v256, %v391
    %v430 = vsel %vm393, %v429, %v428
    %v431 = vperm.slane %v257, %v395
    %v432 = vsel %vm397, %v431, %v430
    %v433 = vperm.slane %v258, %v399
    %v434 = vsel %vm401, %v433, %v432
    %v435 = vperm.slane %v259, %v403
    %v436 = vsel %vm405, %v435, %v434
    %v437 = vperm.slane %v260, %v377
    %v438 = vperm.slane %v261, %v379
    %v439 = vsel %vm381, %v438, %v437
    %v440 = vperm.slane %v262, %v383
    %v441 = vsel %vm385, %v440, %v439
    %v442 = vperm.slane %v263, %v387
    %v443 = vsel %vm389, %v442, %v441
    %v444 = vperm.slane %v264, %v391
    %v445 = vsel %vm393, %v444, %v443
    %v446 = vperm.slane %v265, %v395
    %v447 = vsel %vm397, %v446, %v445
    %v448 = vperm.slane %v266, %v399
    %v449 = vsel %vm401, %v448, %v447
    %v450 = vperm.slane %v267, %v403
    %v451 = vsel %vm405, %v450, %v449
    %v452 = vperm.slane %v268, %v377
    %v453 = vperm.slane %v269, %v379
    %v454 = vsel %vm381, %v453, %v452
    %v455 = vperm.slane %v270, %v383
    %v456 = vsel %vm385, %v455, %v454
    %v457 = vperm.slane %v271, %v387
    %v458 = vsel %vm389, %v457, %v456
    %v459 = vperm.slane %v272, %v391
    %v460 = vsel %vm393, %v459, %v458
    %v461 = vperm.slane %v273, %v395
    %v462 = vsel %vm397, %v461, %v460
    %v463 = vperm.slane %v274, %v399
    %v464 = vsel %vm401, %v463, %v462
    %v465 = vperm.slane %v275, %v403
    %v466 = vsel %vm405, %v465, %v464
    %v467 = vperm.slane %v276, %v377
    %v468 = vperm.slane %v277, %v379
    %v469 = vsel %vm381, %v468, %v467
    %v470 = vperm.slane %v278, %v383
    %v471 = vsel %vm385, %v470, %v469
    %v472 = vperm.slane %v279, %v387
    %v473 = vsel %vm389, %v472, %v471
    %v474 = vperm.slane %v280, %v391
    %v475 = vsel %vm393, %v474, %v473
    %v476 = vperm.slane %v281, %v395
    %v477 = vsel %vm397, %v476, %v475
    %v478 = vperm.slane %v282, %v399
    %v479 = vsel %vm401, %v478, %v477
    %v480 = vperm.slane %v283, %v403
    %v481 = vsel %vm405, %v480, %v479
    %v482 = vperm.slane %v284, %v377
    %v483 = vperm.slane %v285, %v379
    %v484 = vsel %vm381, %v483, %v482
    %v485 = vperm.slane %v286, %v383
    %v486 = vsel %vm385, %v485, %v484
    %v487 = vperm.slane %v287, %v387
    %v488 = vsel %vm389, %v487, %v486
    %v489 = vperm.slane %v288, %v391
    %v490 = vsel %vm393, %v489, %v488
    %v491 = vperm.slane %v289, %v395
    %v492 = vsel %vm397, %v491, %v490
    %v493 = vperm.slane %v290, %v399
    %v494 = vsel %vm401, %v493, %v492
    %v495 = vperm.slane %v291, %v403
    %v496 = vsel %vm405, %v495, %v494
    %v497 = vperm.slane %v292, %v377
    %v498 = vperm.slane %v293, %v379
    %v499 = vsel %vm381, %v498, %v497
    %v500 = vperm.slane %v294, %v383
    %v501 = vsel %vm385, %v500, %v499
    %v502 = vperm.slane %v295, %v387
    %v503 = vsel %vm389, %v502, %v501
    %v504 = vperm.slane %v296, %v391
    %v505 = vsel %vm393, %v504, %v503
    %v506 = vperm.slane %v297, %v395
    %v507 = vsel %vm397, %v506, %v505
    %v508 = vperm.slane %v298, %v399
    %v509 = vsel %vm401, %v508, %v507
    %v510 = vperm.slane %v299, %v403
    %v511 = vsel %vm405, %v510, %v509
    %vm512 = vcmask 1041409
    %v513 = vsel %vm512, %v421, %v406
    %vm514 = vcmask 1042434
    %v515 = vsel %vm514, %v436, %v513
    %vm516 = vcmask 1043459
    %v517 = vsel %vm516, %v451, %v515
    %vm518 = vcmask 1044484
    %v519 = vsel %vm518, %v466, %v517
    %vm520 = vcmask 1045509
    %v521 = vsel %vm520, %v481, %v519
    %vm522 = vcmask 1046534
    %v523 = vsel %vm522, %v496, %v521
    %vm524 = vcmask 1047559
    %v525 = vsel %vm524, %v511, %v523
    %vm526 = vcmask 523264
    %v527 = vsel %vm526, %v525, 0
    %529 = vmatpush.msra.mxu0 0.0
    %530 = vmatpush.msra.mxu0 0.0
    %531 = vmatpush.msra.mxu0 0.0
    %532 = vmatpush.msra.mxu0 0.0
    %533 = vmatpush.msra.mxu0 0.0
    %534 = vmatpush.msra.mxu0 0.0
    %535 = vmatpush.msra.mxu0 0.0
    %536 = vmatpush.msra.mxu0 0.0
    %537 = vmatpush.msra.mxu0 %v307
    %538 = vmatpush.msra.mxu0 %v306
    %539 = vmatpush.msra.mxu0 %v305
    %540 = vmatpush.msra.mxu0 %v304
    %541 = vmatpush.msra.mxu0 %v303
    %542 = vmatpush.msra.mxu0 %v302
    %543 = vmatpush.msra.mxu0 %v301
    %544 = vmatpush.msra.mxu0 %v300
    %545 = vmatmul.f32.gmra.mxu0 %v527
    %v546 = vpop.f32.mrf.mxu0
    %v547 = vadd.f32 %v310, %v546
    %548 = vdwg.mxu0
    %v549 = vmax.f32 %v547, 0.0
    %v550 = vld [vmem:[%s3] sm:$0xff]
    %v551 = vld [vmem:[%s3 + $0x8] sm:$0xff]
    %v552 = vld [vmem:[%s4] sm:$0x1]
    %v554 = vperm.slane %v552, 0
    %vm556 = vcmask 130048
    %v558 = vsel %vm556, %v549, 0
    %560 = vmatpush.msra.mxu0 0.0
    %561 = vmatpush.msra.mxu0 0.0
    %562 = vmatpush.msra.mxu0 0.0
    %563 = vmatpush.msra.mxu0 0.0
    %564 = vmatpush.msra.mxu0 0.0
    %565 = vmatpush.msra.mxu0 0.0
    %566 = vmatpush.msra.mxu0 0.0
    %567 = vmatpush.msra.mxu0 0.0
    %568 = vmatpush.msra.mxu0 0.0
    %569 = vmatpush.msra.mxu0 0.0
    %570 = vmatpush.msra.mxu0 0.0
    %571 = vmatpush.msra.mxu0 0.0
    %572 = vmatpush.msra.mxu0 0.0
    %573 = vmatpush.msra.mxu0 0.0
    %574 = vmatpush.msra.mxu0 %v551
    %575 = vmatpush.msra.mxu0 %v550
    %576 = vmatmul.f32.gmra.mxu0 %v558
    %v577 = vpop.f32.mrf.mxu0
    %v578 = vadd.f32 %v554, %v577
    %579 = vdwg.mxu0
    %v580 = vxor.u32 %v578, 2147483648
    %v581 = vmul.f32 %v580, 1.442695
    %v582 = vpow.pop %v581
    %v583 = vadd.f32 %v582, 1.0
    %v584 = vrcp.pop %v583
    %v585 = vmul.f32 %v583, %v584
    %v586 = vsub.f32 1.0, %v585
    %v587 = vmul.f32 %v584, %v586
    %v588 = vadd.f32 %v584, %v587
    %vm589 = vweird.f32 %v583
    %vm590 = vweird.f32 %v584
    %vm591 = vmor %vm589, %vm590
    %v592 = vsel %vm591, %v584, %v588
    %v593 = vand.u32 2147483647, %v583
    %vm594 = vcmp.eq.f32.partialorder %v593, 8.507059e+37
    %v595 = vand.u32 %v583, 2147483648
    %v596 = vor.u32 1.1754944e-38, %v595
    %v597 = vsel %vm594, %v596, %v592
    %v598 = vmul.f32 1.0, %v597
    %v599 = vperm.slane %v598, 0
    %v600 = vlaneseq
    %v601 = vshrl.u32 %v600, 7
    %603 = vset.pattern.permute.xlu0 %v601
    %604 = vperm.xlu0 %603, %v599
    %v605 = vpop.permute.xlu0 %604
    %v606 = vlaneseq
    %v607 = vshrl.u32 %v606, 7
    %v608 = vadd.s32 %v607, 8
    %609 = vset.pattern.permute.xlu0 %v608
    %610 = vperm.xlu0 %609, %v599
    %v611 = vpop.permute.xlu0 %610
    %v612 = vlaneseq
    %v613 = vshrl.u32 %v612, 7
    %v614 = vadd.s32 %v613, 16
    %615 = vset.pattern.permute.xlu0 %v614
    %616 = vperm.xlu0 %615, %v599
    %v617 = vpop.permute.xlu0 %616
    %v618 = vlaneseq
    %v619 = vshrl.u32 %v618, 7
    %v620 = vadd.s32 %v619, 24
    %621 = vset.pattern.permute.xlu0 %v620
    %622 = vperm.xlu0 %621, %v599
    %v623 = vpop.permute.xlu0 %622
    %v624 = vlaneseq
    %v625 = vshrl.u32 %v624, 7
    %v626 = vadd.s32 %v625, 32
    %627 = vset.pattern.permute.xlu0 %v626
    %628 = vperm.xlu0 %627, %v599
    %v629 = vpop.permute.xlu0 %628
    %v630 = vlaneseq
    %v631 = vshrl.u32 %v630, 7
    %v632 = vadd.s32 %v631, 40
    %633 = vset.pattern.permute.xlu0 %v632
    %634 = vperm.xlu0 %633, %v599
    %v635 = vpop.permute.xlu0 %634
    %v636 = vlaneseq
    %v637 = vshrl.u32 %v636, 7
    %v638 = vadd.s32 %v637, 48
    %639 = vset.pattern.permute.xlu0 %v638
    %640 = vperm.xlu0 %639, %v599
    %v641 = vpop.permute.xlu0 %640
    %v642 = vlaneseq
    %v643 = vshrl.u32 %v642, 7
    %v644 = vadd.s32 %v643, 56
    %645 = vset.pattern.permute.xlu0 %v644
    %646 = vperm.xlu0 %645, %v599
    %v647 = vpop.permute.xlu0 %646
    %v648 = vperm.slane %v598, 1
    %v649 = vlaneseq
    %v650 = vshrl.u32 %v649, 7
    %652 = vset.pattern.permute.xlu0 %v650
    %653 = vperm.xlu0 %652, %v648
    %v654 = vpop.permute.xlu0 %653
    %v655 = vlaneseq
    %v656 = vshrl.u32 %v655, 7
    %v657 = vadd.s32 %v656, 8
    %658 = vset.pattern.permute.xlu0 %v657
    %659 = vperm.xlu0 %658, %v648
    %v660 = vpop.permute.xlu0 %659
    %v661 = vlaneseq
    %v662 = vshrl.u32 %v661, 7
    %v663 = vadd.s32 %v662, 16
    %664 = vset.pattern.permute.xlu0 %v663
    %665 = vperm.xlu0 %664, %v648
    %v666 = vpop.permute.xlu0 %665
    %v667 = vlaneseq
    %v668 = vshrl.u32 %v667, 7
    %v669 = vadd.s32 %v668, 24
    %670 = vset.pattern.permute.xlu0 %v669
    %671 = vperm.xlu0 %670, %v648
    %v672 = vpop.permute.xlu0 %671
    %v673 = vlaneseq
    %v674 = vshrl.u32 %v673, 7
    %v675 = vadd.s32 %v674, 32
    %676 = vset.pattern.permute.xlu0 %v675
    %677 = vperm.xlu0 %676, %v648
    %v678 = vpop.permute.xlu0 %677
    %v679 = vlaneseq
    %v680 = vshrl.u32 %v679, 7
    %v681 = vadd.s32 %v680, 40
    %682 = vset.pattern.permute.xlu0 %v681
    %683 = vperm.xlu0 %682, %v648
    %v684 = vpop.permute.xlu0 %683
    %v685 = vlaneseq
    %v686 = vshrl.u32 %v685, 7
    %v687 = vadd.s32 %v686, 48
    %688 = vset.pattern.permute.xlu0 %v687
    %689 = vperm.xlu0 %688, %v648
    %v690 = vpop.permute.xlu0 %689
    %v691 = vlaneseq
    %v692 = vshrl.u32 %v691, 7
    %v693 = vadd.s32 %v692, 56
    %694 = vset.pattern.permute.xlu0 %v693
    %695 = vperm.xlu0 %694, %v648
    %v696 = vpop.permute.xlu0 %695
    %v697 = vperm.slane %v598, 2
    %v698 = vlaneseq
    %v699 = vshrl.u32 %v698, 7
    %701 = vset.pattern.permute.xlu0 %v699
    %702 = vperm.xlu0 %701, %v697
    %v703 = vpop.permute.xlu0 %702
    %v704 = vlaneseq
    %v705 = vshrl.u32 %v704, 7
    %v706 = vadd.s32 %v705, 8
    %707 = vset.pattern.permute.xlu0 %v706
    %708 = vperm.xlu0 %707, %v697
    %v709 = vpop.permute.xlu0 %708
    %v710 = vlaneseq
    %v711 = vshrl.u32 %v710, 7
    %v712 = vadd.s32 %v711, 16
    %713 = vset.pattern.permute.xlu0 %v712
    %714 = vperm.xlu0 %713, %v697
    %v715 = vpop.permute.xlu0 %714
    %v716 = vlaneseq
    %v717 = vshrl.u32 %v716, 7
    %v718 = vadd.s32 %v717, 24
    %719 = vset.pattern.permute.xlu0 %v718
    %720 = vperm.xlu0 %719, %v697
    %v721 = vpop.permute.xlu0 %720
    %v722 = vlaneseq
    %v723 = vshrl.u32 %v722, 7
    %v724 = vadd.s32 %v723, 32
    %725 = vset.pattern.permute.xlu0 %v724
    %726 = vperm.xlu0 %725, %v697
    %v727 = vpop.permute.xlu0 %726
    %v728 = vlaneseq
    %v729 = vshrl.u32 %v728, 7
    %v730 = vadd.s32 %v729, 40
    %731 = vset.pattern.permute.xlu0 %v730
    %732 = vperm.xlu0 %731, %v697
    %v733 = vpop.permute.xlu0 %732
    %v734 = vlaneseq
    %v735 = vshrl.u32 %v734, 7
    %v736 = vadd.s32 %v735, 48
    %737 = vset.pattern.permute.xlu0 %v736
    %738 = vperm.xlu0 %737, %v697
    %v739 = vpop.permute.xlu0 %738
    %v740 = vlaneseq
    %v741 = vshrl.u32 %v740, 7
    %v742 = vadd.s32 %v741, 56
    %743 = vset.pattern.permute.xlu0 %v742
    %744 = vperm.xlu0 %743, %v697
    %v745 = vpop.permute.xlu0 %744
    %v746 = vperm.slane %v598, 3
    %v747 = vlaneseq
    %v748 = vshrl.u32 %v747, 7
    %750 = vset.pattern.permute.xlu0 %v748
    %751 = vperm.xlu0 %750, %v746
    %v752 = vpop.permute.xlu0 %751
    %v753 = vlaneseq
    %v754 = vshrl.u32 %v753, 7
    %v755 = vadd.s32 %v754, 8
    %756 = vset.pattern.permute.xlu0 %v755
    %757 = vperm.xlu0 %756, %v746
    %v758 = vpop.permute.xlu0 %757
    %v759 = vlaneseq
    %v760 = vshrl.u32 %v759, 7
    %v761 = vadd.s32 %v760, 16
    %762 = vset.pattern.permute.xlu0 %v761
    %763 = vperm.xlu0 %762, %v746
    %v764 = vpop.permute.xlu0 %763
    %v765 = vlaneseq
    %v766 = vshrl.u32 %v765, 7
    %v767 = vadd.s32 %v766, 24
    %768 = vset.pattern.permute.xlu0 %v767
    %769 = vperm.xlu0 %768, %v746
    %v770 = vpop.permute.xlu0 %769
    %v771 = vlaneseq
    %v772 = vshrl.u32 %v771, 7
    %v773 = vadd.s32 %v772, 32
    %774 = vset.pattern.permute.xlu0 %v773
    %775 = vperm.xlu0 %774, %v746
    %v776 = vpop.permute.xlu0 %775
    %v777 = vlaneseq
    %v778 = vshrl.u32 %v777, 7
    %v779 = vadd.s32 %v778, 40
    %780 = vset.pattern.permute.xlu0 %v779
    %781 = vperm.xlu0 %780, %v746
    %v782 = vpop.permute.xlu0 %781
    %v783 = vlaneseq
    %v784 = vshrl.u32 %v783, 7
    %v785 = vadd.s32 %v784, 48
    %786 = vset.pattern.permute.xlu0 %v785
    %787 = vperm.xlu0 %786, %v746
    %v788 = vpop.permute.xlu0 %787
    %v789 = vlaneseq
    %v790 = vshrl.u32 %v789, 7
    %v791 = vadd.s32 %v790, 56
    %792 = vset.pattern.permute.xlu0 %v791
    %793 = vperm.xlu0 %792, %v746
    %v794 = vpop.permute.xlu0 %793
    %v795 = vperm.slane %v598, 4
    %v796 = vlaneseq
    %v797 = vshrl.u32 %v796, 7
    %799 = vset.pattern.permute.xlu0 %v797
    %800 = vperm.xlu0 %799, %v795
    %v801 = vpop.permute.xlu0 %800
    %v802 = vlaneseq
    %v803 = vshrl.u32 %v802, 7
    %v804 = vadd.s32 %v803, 8
    %805 = vset.pattern.permute.xlu0 %v804
    %806 = vperm.xlu0 %805, %v795
    %v807 = vpop.permute.xlu0 %806
    %v808 = vlaneseq
    %v809 = vshrl.u32 %v808, 7
    %v810 = vadd.s32 %v809, 16
    %811 = vset.pattern.permute.xlu0 %v810
    %812 = vperm.xlu0 %811, %v795
    %v813 = vpop.permute.xlu0 %812
    %v814 = vlaneseq
    %v815 = vshrl.u32 %v814, 7
    %v816 = vadd.s32 %v815, 24
    %817 = vset.pattern.permute.xlu0 %v816
    %818 = vperm.xlu0 %817, %v795
    %v819 = vpop.permute.xlu0 %818
    %v820 = vlaneseq
    %v821 = vshrl.u32 %v820, 7
    %v822 = vadd.s32 %v821, 32
    %823 = vset.pattern.permute.xlu0 %v822
    %824 = vperm.xlu0 %823, %v795
    %v825 = vpop.permute.xlu0 %824
    %v826 = vlaneseq
    %v827 = vshrl.u32 %v826, 7
    %v828 = vadd.s32 %v827, 40
    %829 = vset.pattern.permute.xlu0 %v828
    %830 = vperm.xlu0 %829, %v795
    %v831 = vpop.permute.xlu0 %830
    %v832 = vlaneseq
    %v833 = vshrl.u32 %v832, 7
    %v834 = vadd.s32 %v833, 48
    %835 = vset.pattern.permute.xlu0 %v834
    %836 = vperm.xlu0 %835, %v795
    %v837 = vpop.permute.xlu0 %836
    %v838 = vlaneseq
    %v839 = vshrl.u32 %v838, 7
    %v840 = vadd.s32 %v839, 56
    %841 = vset.pattern.permute.xlu0 %v840
    %842 = vperm.xlu0 %841, %v795
    %v843 = vpop.permute.xlu0 %842
    %v844 = vperm.slane %v598, 5
    %v845 = vlaneseq
    %v846 = vshrl.u32 %v845, 7
    %848 = vset.pattern.permute.xlu0 %v846
    %849 = vperm.xlu0 %848, %v844
    %v850 = vpop.permute.xlu0 %849
    %v851 = vlaneseq
    %v852 = vshrl.u32 %v851, 7
    %v853 = vadd.s32 %v852, 8
    %854 = vset.pattern.permute.xlu0 %v853
    %855 = vperm.xlu0 %854, %v844
    %v856 = vpop.permute.xlu0 %855
    %v857 = vlaneseq
    %v858 = vshrl.u32 %v857, 7
    %v859 = vadd.s32 %v858, 16
    %860 = vset.pattern.permute.xlu0 %v859
    %861 = vperm.xlu0 %860, %v844
    %v862 = vpop.permute.xlu0 %861
    %v863 = vlaneseq
    %v864 = vshrl.u32 %v863, 7
    %v865 = vadd.s32 %v864, 24
    %866 = vset.pattern.permute.xlu0 %v865
    %867 = vperm.xlu0 %866, %v844
    %v868 = vpop.permute.xlu0 %867
    %v869 = vlaneseq
    %v870 = vshrl.u32 %v869, 7
    %v871 = vadd.s32 %v870, 32
    %872 = vset.pattern.permute.xlu0 %v871
    %873 = vperm.xlu0 %872, %v844
    %v874 = vpop.permute.xlu0 %873
    %v875 = vlaneseq
    %v876 = vshrl.u32 %v875, 7
    %v877 = vadd.s32 %v876, 40
    %878 = vset.pattern.permute.xlu0 %v877
    %879 = vperm.xlu0 %878, %v844
    %v880 = vpop.permute.xlu0 %879
    %v881 = vlaneseq
    %v882 = vshrl.u32 %v881, 7
    %v883 = vadd.s32 %v882, 48
    %884 = vset.pattern.permute.xlu0 %v883
    %885 = vperm.xlu0 %884, %v844
    %v886 = vpop.permute.xlu0 %885
    %v887 = vlaneseq
    %v888 = vshrl.u32 %v887, 7
    %v889 = vadd.s32 %v888, 56
    %890 = vset.pattern.permute.xlu0 %v889
    %891 = vperm.xlu0 %890, %v844
    %v892 = vpop.permute.xlu0 %891
    %v893 = vperm.slane %v598, 6
    %v894 = vlaneseq
    %v895 = vshrl.u32 %v894, 7
    %897 = vset.pattern.permute.xlu0 %v895
    %898 = vperm.xlu0 %897, %v893
    %v899 = vpop.permute.xlu0 %898
    %v900 = vlaneseq
    %v901 = vshrl.u32 %v900, 7
    %v902 = vadd.s32 %v901, 8
    %903 = vset.pattern.permute.xlu0 %v902
    %904 = vperm.xlu0 %903, %v893
    %v905 = vpop.permute.xlu0 %904
    %v906 = vlaneseq
    %v907 = vshrl.u32 %v906, 7
    %v908 = vadd.s32 %v907, 16
    %909 = vset.pattern.permute.xlu0 %v908
    %910 = vperm.xlu0 %909, %v893
    %v911 = vpop.permute.xlu0 %910
    %v912 = vlaneseq
    %v913 = vshrl.u32 %v912, 7
    %v914 = vadd.s32 %v913, 24
    %915 = vset.pattern.permute.xlu0 %v914
    %916 = vperm.xlu0 %915, %v893
    %v917 = vpop.permute.xlu0 %916
    %v918 = vlaneseq
    %v919 = vshrl.u32 %v918, 7
    %v920 = vadd.s32 %v919, 32
    %921 = vset.pattern.permute.xlu0 %v920
    %922 = vperm.xlu0 %921, %v893
    %v923 = vpop.permute.xlu0 %922
    %v924 = vlaneseq
    %v925 = vshrl.u32 %v924, 7
    %v926 = vadd.s32 %v925, 40
    %927 = vset.pattern.permute.xlu0 %v926
    %928 = vperm.xlu0 %927, %v893
    %v929 = vpop.permute.xlu0 %928
    %v930 = vlaneseq
    %v931 = vshrl.u32 %v930, 7
    %v932 = vadd.s32 %v931, 48
    %933 = vset.pattern.permute.xlu0 %v932
    %934 = vperm.xlu0 %933, %v893
    %v935 = vpop.permute.xlu0 %934
    %v936 = vlaneseq
    %v937 = vshrl.u32 %v936, 7
    %v938 = vadd.s32 %v937, 56
    %939 = vset.pattern.permute.xlu0 %v938
    %940 = vperm.xlu0 %939, %v893
    %v941 = vpop.permute.xlu0 %940
    %v942 = vperm.slane %v598, 7
    %v943 = vlaneseq
    %v944 = vshrl.u32 %v943, 7
    %946 = vset.pattern.permute.xlu0 %v944
    %947 = vperm.xlu0 %946, %v942
    %v948 = vpop.permute.xlu0 %947
    %v949 = vlaneseq
    %v950 = vshrl.u32 %v949, 7
    %v951 = vadd.s32 %v950, 8
    %952 = vset.pattern.permute.xlu0 %v951
    %953 = vperm.xlu0 %952, %v942
    %v954 = vpop.permute.xlu0 %953
    %v955 = vlaneseq
    %v956 = vshrl.u32 %v955, 7
    %v957 = vadd.s32 %v956, 16
    %958 = vset.pattern.permute.xlu0 %v957
    %959 = vperm.xlu0 %958, %v942
    %v960 = vpop.permute.xlu0 %959
    %v961 = vlaneseq
    %v962 = vshrl.u32 %v961, 7
    %v963 = vadd.s32 %v962, 24
    %964 = vset.pattern.permute.xlu0 %v963
    %965 = vperm.xlu0 %964, %v942
    %v966 = vpop.permute.xlu0 %965
    %v967 = vlaneseq
    %v968 = vshrl.u32 %v967, 7
    %v969 = vadd.s32 %v968, 32
    %970 = vset.pattern.permute.xlu0 %v969
    %971 = vperm.xlu0 %970, %v942
    %v972 = vpop.permute.xlu0 %971
    %v973 = vlaneseq
    %v974 = vshrl.u32 %v973, 7
    %v975 = vadd.s32 %v974, 40
    %976 = vset.pattern.permute.xlu0 %v975
    %977 = vperm.xlu0 %976, %v942
    %v978 = vpop.permute.xlu0 %977
    %v979 = vlaneseq
    %v980 = vshrl.u32 %v979, 7
    %v981 = vadd.s32 %v980, 48
    %982 = vset.pattern.permute.xlu0 %v981
    %983 = vperm.xlu0 %982, %v942
    %v984 = vpop.permute.xlu0 %983
    %v985 = vlaneseq
    %v986 = vshrl.u32 %v985, 7
    %v987 = vadd.s32 %v986, 56
    %988 = vset.pattern.permute.xlu0 %v987
    %989 = vperm.xlu0 %988, %v942
    %v990 = vpop.permute.xlu0 %989
    %v991 = vmul.f32 %v37, %v605
    %v992 = vmul.f32 %v38, %v611
    %v993 = vmul.f32 %v39, %v617
    %v994 = vmul.f32 %v40, %v623
    %v995 = vmul.f32 %v41, %v629
    %v996 = vmul.f32 %v42, %v635
    %v997 = vmul.f32 %v43, %v641
    %v998 = vmul.f32 %v44, %v647
    %v999 = vmul.f32 %v45, %v654
    %v1000 = vmul.f32 %v46, %v660
    %v1001 = vmul.f32 %v47, %v666
    %v1002 = vmul.f32 %v48, %v672
    %v1003 = vmul.f32 %v49, %v678
    %v1004 = vmul.f32 %v50, %v684
    %v1005 = vmul.f32 %v51, %v690
    %v1006 = vmul.f32 %v52, %v696
    %v1007 = vmul.f32 %v53, %v703
    %v1008 = vmul.f32 %v54, %v709
    %v1009 = vmul.f32 %v55, %v715
    %v1010 = vmul.f32 %v56, %v721
    %v1011 = vmul.f32 %v57, %v727
    %v1012 = vmul.f32 %v58, %v733
    %v1013 = vmul.f32 %v59, %v739
    %v1014 = vmul.f32 %v60, %v745
    %v1015 = vmul.f32 %v61, %v752
    %v1016 = vmul.f32 %v62, %v758
    %v1017 = vmul.f32 %v63, %v764
    %v1018 = vmul.f32 %v64, %v770
    %v1019 = vmul.f32 %v65, %v776
    %v1020 = vmul.f32 %v66, %v782
    %v1021 = vmul.f32 %v67, %v788
    %v1022 = vmul.f32 %v68, %v794
    %v1023 = vmul.f32 %v69, %v801
    %v1024 = vmul.f32 %v70, %v807
    %v1025 = vmul.f32 %v71, %v813
    %v1026 = vmul.f32 %v72, %v819
    %v1027 = vmul.f32 %v73, %v825
    %v1028 = vmul.f32 %v74, %v831
    %v1029 = vmul.f32 %v75, %v837
    %v1030 = vmul.f32 %v76, %v843
    %v1031 = vmul.f32 %v77, %v850
    %v1032 = vmul.f32 %v78, %v856
    %v1033 = vmul.f32 %v79, %v862
    %v1034 = vmul.f32 %v80, %v868
    %v1035 = vmul.f32 %v81, %v874
    %v1036 = vmul.f32 %v82, %v880
    %v1037 = vmul.f32 %v83, %v886
    %v1038 = vmul.f32 %v84, %v892
    %v1039 = vmul.f32 %v85, %v899
    %v1040 = vmul.f32 %v86, %v905
    %v1041 = vmul.f32 %v87, %v911
    %v1042 = vmul.f32 %v88, %v917
    %v1043 = vmul.f32 %v89, %v923
    %v1044 = vmul.f32 %v90, %v929
    %v1045 = vmul.f32 %v91, %v935
    %v1046 = vmul.f32 %v92, %v941
    %v1047 = vmul.f32 %v93, %v948
    %v1048 = vmul.f32 %v94, %v954
    %v1049 = vmul.f32 %v95, %v960
    %v1050 = vmul.f32 %v96, %v966
    %v1051 = vmul.f32 %v97, %v972
    %v1052 = vmul.f32 %v98, %v978
    %v1053 = vmul.f32 %v99, %v984
    %v1054 = vmul.f32 %v100, %v990
    %1055 = vst [vmem:[#allocation5] sm:$0xff] %v991
    %1056 = vst [vmem:[#allocation5 + $0x8] sm:$0xff] %v992
    %1057 = vst [vmem:[#allocation5 + $0x10] sm:$0xff] %v993
    %1058 = vst [vmem:[#allocation5 + $0x18] sm:$0xff] %v994
    %1059 = vst [vmem:[#allocation5 + $0x20] sm:$0xff] %v995
    %1060 = vst [vmem:[#allocation5 + $0x28] sm:$0xff] %v996
    %1061 = vst [vmem:[#allocation5 + $0x30] sm:$0xff] %v997
    %1062 = vst [vmem:[#allocation5 + $0x38] sm:$0xff] %v998
    %1063 = vst [vmem:[#allocation5 + $0x40] sm:$0xff] %v999
    %1064 = vst [vmem:[#allocation5 + $0x48] sm:$0xff] %v1000
    %1065 = vst [vmem:[#allocation5 + $0x50] sm:$0xff] %v1001
    %1066 = vst [vmem:[#allocation5 + $0x58] sm:$0xff] %v1002
    %1067 = vst [vmem:[#allocation5 + $0x60] sm:$0xff] %v1003
    %1068 = vst [vmem:[#allocation5 + $0x68] sm:$0xff] %v1004
    %1069 = vst [vmem:[#allocation5 + $0x70] sm:$0xff] %v1005
    %1070 = vst [vmem:[#allocation5 + $0x78] sm:$0xff] %v1006
    %1071 = vst [vmem:[#allocation5 + $0x80] sm:$0xff] %v1007
    %1072 = vst [vmem:[#allocation5 + $0x88] sm:$0xff] %v1008
    %1073 = vst [vmem:[#allocation5 + $0x90] sm:$0xff] %v1009
    %1074 = vst [vmem:[#allocation5 + $0x98] sm:$0xff] %v1010
    %1075 = vst [vmem:[#allocation5 + $0xa0] sm:$0xff] %v1011
    %1076 = vst [vmem:[#allocation5 + $0xa8] sm:$0xff] %v1012
    %1077 = vst [vmem:[#allocation5 + $0xb0] sm:$0xff] %v1013
    %1078 = vst [vmem:[#allocation5 + $0xb8] sm:$0xff] %v1014
    %1079 = vst [vmem:[#allocation5 + $0xc0] sm:$0xff] %v1015
    %1080 = vst [vmem:[#allocation5 + $0xc8] sm:$0xff] %v1016
    %1081 = vst [vmem:[#allocation5 + $0xd0] sm:$0xff] %v1017
    %1082 = vst [vmem:[#allocation5 + $0xd8] sm:$0xff] %v1018
    %1083 = vst [vmem:[#allocation5 + $0xe0] sm:$0xff] %v1019
    %1084 = vst [vmem:[#allocation5 + $0xe8] sm:$0xff] %v1020
    %1085 = vst [vmem:[#allocation5 + $0xf0] sm:$0xff] %v1021
    %1086 = vst [vmem:[#allocation5 + $0xf8] sm:$0xff] %v1022
    %1087 = vst [vmem:[#allocation5 + $0x100] sm:$0xff] %v1023
    %1088 = vst [vmem:[#allocation5 + $0x108] sm:$0xff] %v1024
    %1089 = vst [vmem:[#allocation5 + $0x110] sm:$0xff] %v1025
    %1090 = vst [vmem:[#allocation5 + $0x118] sm:$0xff] %v1026
    %1091 = vst [vmem:[#allocation5 + $0x120] sm:$0xff] %v1027
    %1092 = vst [vmem:[#allocation5 + $0x128] sm:$0xff] %v1028
    %1093 = vst [vmem:[#allocation5 + $0x130] sm:$0xff] %v1029
    %1094 = vst [vmem:[#allocation5 + $0x138] sm:$0xff] %v1030
    %1095 = vst [vmem:[#allocation5 + $0x140] sm:$0xff] %v1031
    %1096 = vst [vmem:[#allocation5 + $0x148] sm:$0xff] %v1032
    %1097 = vst [vmem:[#allocation5 + $0x150] sm:$0xff] %v1033
    %1098 = vst [vmem:[#allocation5 + $0x158] sm:$0xff] %v1034
    %1099 = vst [vmem:[#allocation5 + $0x160] sm:$0xff] %v1035
    %1100 = vst [vmem:[#allocation5 + $0x168] sm:$0xff] %v1036
    %1101 = vst [vmem:[#allocation5 + $0x170] sm:$0xff] %v1037
    %1102 = vst [vmem:[#allocation5 + $0x178] sm:$0xff] %v1038
    %1103 = vst [vmem:[#allocation5 + $0x180] sm:$0xff] %v1039
    %1104 = vst [vmem:[#allocation5 + $0x188] sm:$0xff] %v1040
    %1105 = vst [vmem:[#allocation5 + $0x190] sm:$0xff] %v1041
    %1106 = vst [vmem:[#allocation5 + $0x198] sm:$0xff] %v1042
    %1107 = vst [vmem:[#allocation5 + $0x1a0] sm:$0xff] %v1043
    %1108 = vst [vmem:[#allocation5 + $0x1a8] sm:$0xff] %v1044
    %1109 = vst [vmem:[#allocation5 + $0x1b0] sm:$0xff] %v1045
    %1110 = vst [vmem:[#allocation5 + $0x1b8] sm:$0xff] %v1046
    %1111 = vst [vmem:[#allocation5 + $0x1c0] sm:$0xff] %v1047
    %1112 = vst [vmem:[#allocation5 + $0x1c8] sm:$0xff] %v1048
    %1113 = vst [vmem:[#allocation5 + $0x1d0] sm:$0xff] %v1049
    %1114 = vst [vmem:[#allocation5 + $0x1d8] sm:$0xff] %v1050
    %1115 = vst [vmem:[#allocation5 + $0x1e0] sm:$0xff] %v1051
    %1116 = vst [vmem:[#allocation5 + $0x1e8] sm:$0xff] %v1052
    %1117 = vst [vmem:[#allocation5 + $0x1f0] sm:$0xff] %v1053
    %1118 = vst [vmem:[#allocation5 + $0x1f8] sm:$0xff] %v1054
    // Predicated region
    $region26: #{tpu_custom_call.1} parent=1 // pred_check
      _
    $region27: #{tpu_custom_call.1} parent=1 // pred_check_branch
      %1120 = sbr.rel (0) target = $region29
    $region28: #{tpu_custom_call.1} parent=1 // pred_region
      %1122 = vsyncadd [#allocation4], 0
      %s1123 = sshll.u32 [#allocation5], 4
      %s1124 = int_to_ptr.vmem [resolvable:$true] %s1123
      %s1125 = sshll.u32 %s5, 4
      %s1126 = int_to_ptr.hbm [resolvable:$true] %s1125
      %1131 = dma.vmem_to_hbm [thread:$0]  %s1124, 8192, %s1126, [#allocation4], 128, 128, 8
    $region29: #{tpu_custom_call.1} parent=1 // pred_fallthru
      _
    // Predicated region
    $region30: #{tpu_custom_call.1} parent=1 // pred_check
      _
    $region31: #{tpu_custom_call.1} parent=1 // pred_check_branch
      %1133 = sbr.rel (0) target = $region33
    $region32: #{tpu_custom_call.1} parent=1 // pred_region
      %1135 = dma.done [#allocation4], 8192
    $region33: #{tpu_custom_call.1} parent=1 // pred_fallthru
      _
    %1136 = vsyncpa [#allocation3], 1
    %1137 = vsyncpa [#allocation4], 1

</llo_original>
